<compile_context>
chip_gen: v7x
topology: tpu7x:2x2x1
jax: 0.10.0
libtpu: 0.0.40
codegen_flags: <defaults>
</compile_context>

<pallas_src>
import functools
import math

import jax
import jax.numpy as jnp
from jax import lax
from jax.experimental import pallas as pl
from jax.experimental.pallas import tpu as pltpu


def _round_up(v, m):
    return ((v + m - 1) // m) * m


def _fused_dense_gcn_kernel(adj_ref, d_ref, x_ref, *refs, layer_cfg):
    """All DenseGCNConv layers in one kernel invocation.

    refs = (w0_t, b0, w1_t, b1, ..., out0, out1, ...)
    layer_cfg[l] = (propagate_first, apply_relu, add_bias)
    """
    num_layers = len(layer_cfg)
    param_refs = refs[: 2 * num_layers]
    out_refs = refs[2 * num_layers:]

    adj = adj_ref[...]                                  # (Np, Np) bf16
    d = d_ref[...]                                      # (Np, 1)  f32, layer-invariant
    feat = x_ref[...].astype(jnp.float32)               # (Np, C0p) f32

    for l, (propagate_first, apply_relu, add_bias) in enumerate(layer_cfg):
        w_t = param_refs[2 * l][...]                    # (Cin_p, Cout_p) bf16
        b = param_refs[2 * l + 1][...]                  # (1, Cout_p)     f32

        if propagate_first:
            # out = (D^{-1/2} A D^{-1/2} x) W_t  -- cheaper N^2 matmul if Cin < Cout
            s = (d * feat).astype(jnp.bfloat16)                          # (Np, Cin_p)
            p = d * jnp.dot(adj, s, preferred_element_type=jnp.float32)  # (Np, Cin_p)
            out = jnp.dot(p.astype(jnp.bfloat16), w_t,
                          preferred_element_type=jnp.float32)            # (Np, Cout_p)
        else:
            # out = D^{-1/2} A D^{-1/2} (x W_t)
            h = jnp.dot(feat.astype(jnp.bfloat16), w_t,
                        preferred_element_type=jnp.float32)              # (Np, Cout_p)
            s = (d * h).astype(jnp.bfloat16)
            out = d * jnp.dot(adj, s, preferred_element_type=jnp.float32)

        if add_bias:
            out = out + b
        if apply_relu:
            out = jnp.maximum(out, 0.0)

        out_refs[l][...] = out.astype(out_refs[l].dtype)
        feat = out


@functools.partial(jax.jit, static_argnames=("relu_flags", "bias_zero_flags"))
def fused_dense_gcn_block(x, adj, weights_t, biases, *, relu_flags, bias_zero_flags):
    """Run the whole DenseGCNBlock forward in one pallas_call.

    x: (N, C0) f32, adj: (N, N) f32 (0/1 dense adjacency),
    weights_t[l]: (C_l, C_{l+1}) f32 (pre-transposed), biases[l]: (1, C_{l+1}).
    Returns: list of per-layer embeddings [(N, C_1), (N, C_2), ...].
    """
    num_layers = len(weights_t)
    n = x.shape[0]
    dims = [x.shape[1]] + [w.shape[1] for w in weights_t]

    n_p = _round_up(max(n, 128), 128)             # lane/MXU-K aligned node count
    dims_p = [_round_up(c, 128) for c in dims]    # lane-dense channel dims

    # Exact zero padding. Pad columns of adj are zero, so padded rows never
    # leak into real rows; padded channel lanes carry zero weights / bias.
    # (With a nonzero bias, padded ROWS become b / relu(b) -- harmless here
    # since they are sliced off and never reduced over.)
    x_p = jnp.zeros((n_p, dims_p[0]), jnp.float32).at[:n, :dims[0]].set(
        x.astype(jnp.float32))
    adj_p = jnp.zeros((n_p, n_p), jnp.float32).at[:n, :n].set(
        adj.astype(jnp.float32))
    adj_b = adj_p.astype(jnp.bfloat16)            # exact for a 0/1 adjacency

    # Degree / symmetric-normalization vector, computed ONCE in the wrapper
    # (fuses with the pad/cast pass; no second O(N^2) f32 adj inside the kernel).
    deg = jnp.maximum(jnp.sum(adj_p, axis=-1, keepdims=True), 1.0)   # clamp(min=1)
    d_p = lax.rsqrt(deg)                                             # (Np, 1) f32

    flat_params = []
    layer_cfg = []
    flops = 0
    bytes_accessed = n_p * n_p * 2 + n_p * dims_p[0] * 4 + n_p * 4
    for l in range(num_layers):
        cin, cout = dims[l], dims[l + 1]
        w_pad = jnp.zeros((dims_p[l], dims_p[l + 1]), jnp.bfloat16)
        w_pad = w_pad.at[:cin, :cout].set(weights_t[l].astype(jnp.bfloat16))
        b_pad = jnp.zeros((1, dims_p[l + 1]), jnp.float32)
        b_pad = b_pad.at[0, :cout].set(
            jnp.reshape(biases[l], (-1,)).astype(jnp.float32))
        flat_params += [w_pad, b_pad]

        propagate_first = cin < cout              # MXU FLOP-order choice
        layer_cfg.append((propagate_first, bool(relu_flags[l]),
                          not bool(bias_zero_flags[l])))

        c_prop = dims_p[l] if propagate_first else dims_p[l + 1]
        flops += 2 * n_p * n_p * c_prop + 2 * n_p * dims_p[l] * dims_p[l + 1]
        bytes_accessed += (dims_p[l] * dims_p[l + 1] * 2 + dims_p[l + 1] * 4
                           + n_p * dims_p[l + 1] * 4)

    in_arrays = [adj_b, d_p, x_p] + flat_params

    # Single invocation (no grid): whole arrays resident in VMEM, no
    # double-buffering of adj / weights.
    vmem_spec = pl.BlockSpec(memory_space=pltpu.MemorySpace.VMEM)
    in_specs = [vmem_spec] * len(in_arrays)

    out_shape = tuple(
        jax.ShapeDtypeStruct((n_p, dims_p[l + 1]), jnp.float32)
        for l in range(num_layers))
    out_specs = tuple(vmem_spec for _ in out_shape)

    footprint = sum(math.prod(a.shape) * a.dtype.itemsize for a in in_arrays)
    footprint += sum(math.prod(s.shape) * 4 for s in out_shape)
    vmem_limit = int(min(64 * 1024 * 1024, max(16 * 1024 * 1024, 2 * footprint)))

    kernel = functools.partial(_fused_dense_gcn_kernel,
                               layer_cfg=tuple(layer_cfg))
    outs = pl.pallas_call(
        kernel,
        out_shape=out_shape,
        in_specs=in_specs,
        out_specs=out_specs,
        compiler_params=pltpu.CompilerParams(vmem_limit_bytes=vmem_limit),
        cost_estimate=pl.CostEstimate(flops=flops, transcendentals=0,
                                      bytes_accessed=bytes_accessed),
    )(*in_arrays)

    # Slice the zero padding back off.
    return [outs[l][:n, :dims[l + 1]] for l in range(num_layers)]


def glorot_t(key, fan_in, fan_out, dtype=jnp.float32):
    """Glorot-uniform weight stored already transposed as (fan_in, fan_out)."""
    limit = float(jnp.sqrt(6.0 / (fan_in + fan_out)))
    return jax.random.uniform(key, (fan_in, fan_out), dtype,
                              minval=-limit, maxval=limit)


class DenseGCNBlockPallas:
    """JAX/Pallas port of DenseGCNBlock (DenseGCNConv stack, add_loop=False)."""

    def __init__(self, key, gcn_layers_dim, dropout_rate=0.0,
                 relu_layers_index=(), dropout_layers_index=()):
        self.relu_layers_index = set(relu_layers_index)
        self.dropout_layers_index = set(dropout_layers_index)
        self.dropout_rate = dropout_rate
        self.weights_t = []   # pre-transposed: (Cin, Cout), kept in f32
        self.biases = []      # (1, Cout), zero-init (PyG)
        for i in range(len(gcn_layers_dim) - 1):
            key, wk = jax.random.split(key)
            cin, cout = gcn_layers_dim[i], gcn_layers_dim[i + 1]
            self.weights_t.append(glorot_t(wk, cin, cout))
            self.biases.append(jnp.zeros((1, cout), jnp.float32))
        self.num_layers = len(self.weights_t)

    def __call__(self, x, adj):
        # x: (N, C0), adj: (N, N).  Returns per-layer embeddings, matching
        # torch.squeeze(output, dim=0) for batch size 1.
        relu_flags = tuple(l in self.relu_layers_index
                           for l in range(self.num_layers))
        # Skip the bias add only when it is provably all-zero (concrete params).
        try:
            bias_zero_flags = tuple(bool(jnp.all(b == 0.0)) for b in self.biases)
        except Exception:
            bias_zero_flags = (False,) * self.num_layers
        # TODO(synk): training-time Dropout is stateful; with rate=0.0 / eval
        # mode it is an exact identity, so it is omitted from the kernel.
        return fused_dense_gcn_block(x, adj, tuple(self.weights_t),
                                     tuple(self.biases),
                                     relu_flags=relu_flags,
                                     bias_zero_flags=bias_zero_flags)


if __name__ == "__main__":
    key = jax.random.PRNGKey(0)
    k_x, k_adj, k_params = jax.random.split(key, 3)

    N = 16
    gcn_layers_dim = [32, 64, 64]

    # Node features.
    x = jax.random.normal(k_x, (N, gcn_layers_dim[0]), jnp.float32)

    # Symmetric 0/1 adjacency, no self-loops (add_loop=False in the module).
    a = jax.random.uniform(k_adj, (N, N))
    adj = (a + a.T > 1.0).astype(jnp.float32)
    adj = adj * (1.0 - jnp.eye(N, dtype=jnp.float32))

    block = DenseGCNBlockPallas(
        k_params, gcn_layers_dim, dropout_rate=0.0,
        relu_layers_index=[0, 1], dropout_layers_index=[])

    embeddings = block(x, adj)
    embeddings = [jax.block_until_ready(e) for e in embeddings]

    # Pure-JAX f32 reference (DenseGCNConv semantics, add_loop=False).
    def ref_layer(feat, adj_f, w_t, b, relu):
        h = feat @ w_t
        deg = jnp.maximum(jnp.sum(adj_f, axis=-1, keepdims=True), 1.0)
        d = deg ** -0.5
        out = d * (adj_f @ (d * h)) + b
        return jnp.maximum(out, 0.0) if relu else out

    feat = x
    for l in range(block.num_layers):
        feat = ref_layer(feat, adj, block.weights_t[l], block.biases[l],
                         l in block.relu_layers_index)
        err = float(jnp.max(jnp.abs(feat - embeddings[l])))
        tol = 2e-2 + 3e-2 * float(jnp.max(jnp.abs(feat)))  # bf16 weights + prop
        assert err < tol, (l, err, tol)

    assert embeddings[0].shape == (N, gcn_layers_dim[1])
    assert embeddings[1].shape == (N, gcn_layers_dim[2])
    assert all(bool(jnp.all(jnp.isfinite(e))) for e in embeddings)
    print("KERNEL_OK")
</pallas_src>

<mosaic_0001>
module attributes {stable_mosaic.version = 11 : i64} {
  func.func @_fused_dense_gcn_kernel(%arg0: memref<128x128xbf16, #tpu.memory_space<vmem>>, %arg1: memref<128x1xf32, #tpu.memory_space<vmem>>, %arg2: memref<128x128xf32, #tpu.memory_space<vmem>>, %arg3: memref<128x128xbf16, #tpu.memory_space<vmem>>, %arg4: memref<1x128xf32, #tpu.memory_space<vmem>>, %arg5: memref<128x128xbf16, #tpu.memory_space<vmem>>, %arg6: memref<1x128xf32, #tpu.memory_space<vmem>>, %arg7: memref<128x128xf32, #tpu.memory_space<vmem>>, %arg8: memref<128x128xf32, #tpu.memory_space<vmem>>) attributes {dimension_semantics = [], scalar_prefetch = 0 : i64, scratch_operands = 0 : i64, tpu.core_type = #tpu.core_type<tc>} {
    %c0 = arith.constant 0 : index
    %c0_0 = arith.constant 0 : index
    %0 = vector.load %arg0[%c0, %c0_0] : memref<128x128xbf16, #tpu.memory_space<vmem>>, vector<128x128xbf16>
    %c0_1 = arith.constant 0 : index
    %c0_2 = arith.constant 0 : index
    %1 = vector.load %arg1[%c0_1, %c0_2] : memref<128x1xf32, #tpu.memory_space<vmem>>, vector<128x1xf32>
    %c0_3 = arith.constant 0 : index
    %c0_4 = arith.constant 0 : index
    %2 = vector.load %arg2[%c0_3, %c0_4] : memref<128x128xf32, #tpu.memory_space<vmem>>, vector<128x128xf32>
    %c0_5 = arith.constant 0 : index
    %c0_6 = arith.constant 0 : index
    %3 = vector.load %arg3[%c0_5, %c0_6] : memref<128x128xbf16, #tpu.memory_space<vmem>>, vector<128x128xbf16>
    %4 = vector.broadcast %1 : vector<128x1xf32> to vector<128x128xf32>
    %5 = arith.mulf %4, %2 : vector<128x128xf32>
    %6 = arith.truncf %5 : vector<128x128xf32> to vector<128x128xbf16>
    %cst = arith.constant dense<0.000000e+00> : vector<128x128xf32>
    %7 = tpu.matmul %0, %6, %cst {dimension_numbers = #tpu.dot_dimension_numbers<[1], [0], [0], [1], [0, 0, 1, 1], [], []>} : vector<128x128xbf16>, vector<128x128xbf16>, vector<128x128xf32> -> vector<128x128xf32>
    %8 = vector.broadcast %1 : vector<128x1xf32> to vector<128x128xf32>
    %9 = arith.mulf %8, %7 : vector<128x128xf32>
    %10 = arith.truncf %9 : vector<128x128xf32> to vector<128x128xbf16>
    %cst_7 = arith.constant dense<0.000000e+00> : vector<128x128xf32>
    %11 = tpu.matmul %10, %3, %cst_7 {dimension_numbers = #tpu.dot_dimension_numbers<[1], [0], [0], [1], [0, 0, 1, 1], [], []>} : vector<128x128xbf16>, vector<128x128xbf16>, vector<128x128xf32> -> vector<128x128xf32>
    %cst_8 = arith.constant 0.000000e+00 : f32
    %12 = vector.broadcast %cst_8 : f32 to vector<128x128xf32>
    %13 = arith.maximumf %11, %12 : vector<128x128xf32>
    %c0_9 = arith.constant 0 : index
    %c0_10 = arith.constant 0 : index
    %14 = vector.load %arg7[%c0_9, %c0_10] : memref<128x128xf32, #tpu.memory_space<vmem>>, vector<128x128xf32>
    tpu.vector_store %arg7[%c0_9, %c0_10], %13 {strides = array<i32>} : memref<128x128xf32, #tpu.memory_space<vmem>>, vector<128x128xf32>,
    %c0_11 = arith.constant 0 : index
    %c0_12 = arith.constant 0 : index
    %15 = vector.load %arg5[%c0_11, %c0_12] : memref<128x128xbf16, #tpu.memory_space<vmem>>, vector<128x128xbf16>
    %16 = arith.truncf %13 : vector<128x128xf32> to vector<128x128xbf16>
    %cst_13 = arith.constant dense<0.000000e+00> : vector<128x128xf32>
    %17 = tpu.matmul %16, %15, %cst_13 {dimension_numbers = #tpu.dot_dimension_numbers<[1], [0], [0], [1], [0, 0, 1, 1], [], []>} : vector<128x128xbf16>, vector<128x128xbf16>, vector<128x128xf32> -> vector<128x128xf32>
    %18 = vector.broadcast %1 : vector<128x1xf32> to vector<128x128xf32>
    %19 = arith.mulf %18, %17 : vector<128x128xf32>
    %20 = arith.truncf %19 : vector<128x128xf32> to vector<128x128xbf16>
    %cst_14 = arith.constant dense<0.000000e+00> : vector<128x128xf32>
    %21 = tpu.matmul %0, %20, %cst_14 {dimension_numbers = #tpu.dot_dimension_numbers<[1], [0], [0], [1], [0, 0, 1, 1], [], []>} : vector<128x128xbf16>, vector<128x128xbf16>, vector<128x128xf32> -> vector<128x128xf32>
    %22 = vector.broadcast %1 : vector<128x1xf32> to vector<128x128xf32>
    %23 = arith.mulf %22, %21 : vector<128x128xf32>
    %cst_15 = arith.constant 0.000000e+00 : f32
    %24 = vector.broadcast %cst_15 : f32 to vector<128x128xf32>
    %25 = arith.maximumf %23, %24 : vector<128x128xf32>
    %c0_16 = arith.constant 0 : index
    %c0_17 = arith.constant 0 : index
    %26 = vector.load %arg8[%c0_16, %c0_17] : memref<128x128xf32, #tpu.memory_space<vmem>>, vector<128x128xf32>
    tpu.vector_store %arg8[%c0_16, %c0_17], %25 {strides = array<i32>} : memref<128x128xf32, #tpu.memory_space<vmem>>, vector<128x128xf32>,
    return
  }
}

</mosaic_0001>

<llo_original>
// kernel: fused_dense_gcn_block.1
$region0: #{fused_dense_gcn_block.1}
  #allocation0 [shape = 'u32[]', space=smem, size = 0x4, offset = 0x4, fixed_abs, tag = 'smem constant byte address 0x4 - core index']
  #allocation1 [shape = 'u32[144,128]{1,0:T(1,128)}', space=vmem, size = 0x12000, scoped, tag = 'internal scratch']
  %s0 = inlined_call_operand.vmem [shape: bf16[128,128], index: 0, kind: input, shape index: {}]
  %s1 = inlined_call_operand.vmem [shape: f32[128,1], index: 1, kind: input, shape index: {}]
  %s2 = inlined_call_operand.vmem [shape: f32[128,128], index: 2, kind: input, shape index: {}]
  %s3 = inlined_call_operand.vmem [shape: bf16[128,128], index: 3, kind: input, shape index: {}]
  %s4 = inlined_call_operand.vmem [shape: f32[1,128], index: 4, kind: input, shape index: {}]
  %s5 = inlined_call_operand.vmem [shape: bf16[128,128], index: 5, kind: input, shape index: {}]
  %s6 = inlined_call_operand.vmem [shape: f32[1,128], index: 6, kind: input, shape index: {}]
  %s7 = inlined_call_operand.vmem [shape: f32[128,128], index: 7, kind: output, shape index: {0}]
  %s8 = inlined_call_operand.vmem [shape: f32[128,128], index: 8, kind: output, shape index: {1}]
  %9 = xla_tuple %s7, %s8
  %s10 = sld [smem:[#allocation0]]
  $region46: #{fused_dense_gcn_block.1} parent=0
    _
  %s12 = ssub.s32 1, %s10
  %s13 = scalar_select 0, %s12, %s10
  // Predicated region
  $region2: #{fused_dense_gcn_block.1} parent=0 // pred_check
    _
  $region3: #{fused_dense_gcn_block.1} parent=0 // pred_check_branch
    %15 = sbr.rel (0) target = $region5
  $region4: #{fused_dense_gcn_block.1} parent=0 // pred_region
    _
  $region5: #{fused_dense_gcn_block.1} parent=0 // pred_fallthru
    _
  // Predicated region
  $region6: #{fused_dense_gcn_block.1} parent=0 // pred_check
    _
  $region7: #{fused_dense_gcn_block.1} parent=0 // pred_check_branch
    %17 = sbr.rel (0) target = $region9
  $region8: #{fused_dense_gcn_block.1} parent=0 // pred_region
    _
  $region9: #{fused_dense_gcn_block.1} parent=0 // pred_fallthru
    _
  // Predicated region
  $region10: #{fused_dense_gcn_block.1} parent=0 // pred_check
    _
  $region11: #{fused_dense_gcn_block.1} parent=0 // pred_check_branch
    %19 = sbr.rel (0) target = $region13
  $region12: #{fused_dense_gcn_block.1} parent=0 // pred_region
    _
  $region13: #{fused_dense_gcn_block.1} parent=0 // pred_fallthru
    _
  // Predicated region
  $region14: #{fused_dense_gcn_block.1} parent=0 // pred_check
    _
  $region15: #{fused_dense_gcn_block.1} parent=0 // pred_check_branch
    %21 = sbr.rel (0) target = $region17
  $region16: #{fused_dense_gcn_block.1} parent=0 // pred_region
    _
  $region17: #{fused_dense_gcn_block.1} parent=0 // pred_fallthru
    _
  // Predicated region
  $region18: #{fused_dense_gcn_block.1} parent=0 // pred_check
    _
  $region19: #{fused_dense_gcn_block.1} parent=0 // pred_check_branch
    %23 = sbr.rel (0) target = $region21
  $region20: #{fused_dense_gcn_block.1} parent=0 // pred_region
    _
  $region21: #{fused_dense_gcn_block.1} parent=0 // pred_fallthru
    _
  // Predicated region
  $region22: #{fused_dense_gcn_block.1} parent=0 // pred_check
    _
  $region23: #{fused_dense_gcn_block.1} parent=0 // pred_check_branch
    %25 = sbr.rel (0) target = $region25
  $region24: #{fused_dense_gcn_block.1} parent=0 // pred_region
    _
  $region25: #{fused_dense_gcn_block.1} parent=0 // pred_fallthru
    _
  // Predicated region
  $region26: #{fused_dense_gcn_block.1} parent=0 // pred_check
    _
  $region27: #{fused_dense_gcn_block.1} parent=0 // pred_check_branch
    %27 = sbr.rel (0) target = $region29
  $region28: #{fused_dense_gcn_block.1} parent=0 // pred_region
    _
  $region29: #{fused_dense_gcn_block.1} parent=0 // pred_fallthru
    _
  %v29 = vld [vmem:[%s0] sm:$0xf]
  %v30 = vld [vmem:[%s0 + $0x4] sm:$0xf]
  %v31 = vld [vmem:[%s0 + $0x8] sm:$0xf]
  %v32 = vld [vmem:[%s0 + $0xc] sm:$0xf]
  %v33 = vld [vmem:[%s0 + $0x10] sm:$0xf]
  %v34 = vld [vmem:[%s0 + $0x14] sm:$0xf]
  %v35 = vld [vmem:[%s0 + $0x18] sm:$0xf]
  %v36 = vld [vmem:[%s0 + $0x1c] sm:$0xf]
  %v37 = vld [vmem:[%s0 + $0x20] sm:$0xf]
  %v38 = vld [vmem:[%s0 + $0x24] sm:$0xf]
  %v39 = vld [vmem:[%s0 + $0x28] sm:$0xf]
  %v40 = vld [vmem:[%s0 + $0x2c] sm:$0xf]
  %v41 = vld [vmem:[%s0 + $0x30] sm:$0xf]
  %v42 = vld [vmem:[%s0 + $0x34] sm:$0xf]
  %v43 = vld [vmem:[%s0 + $0x38] sm:$0xf]
  %v44 = vld [vmem:[%s0 + $0x3c] sm:$0xf]
  %v45 = vld [vmem:[%s1] sm:$0xff]
  %v46 = vld [vmem:[%s1 + $0x8] sm:$0xff]
  %v47 = vld [vmem:[%s1 + $0x10] sm:$0xff]
  %v48 = vld [vmem:[%s1 + $0x18] sm:$0xff]
  %v49 = vld [vmem:[%s1 + $0x20] sm:$0xff]
  %v50 = vld [vmem:[%s1 + $0x28] sm:$0xff]
  %v51 = vld [vmem:[%s1 + $0x30] sm:$0xff]
  %v52 = vld [vmem:[%s1 + $0x38] sm:$0xff]
  %v53 = vld [vmem:[%s1 + $0x40] sm:$0xff]
  %v54 = vld [vmem:[%s1 + $0x48] sm:$0xff]
  %v55 = vld [vmem:[%s1 + $0x50] sm:$0xff]
  %v56 = vld [vmem:[%s1 + $0x58] sm:$0xff]
  %v57 = vld [vmem:[%s1 + $0x60] sm:$0xff]
  %v58 = vld [vmem:[%s1 + $0x68] sm:$0xff]
  %v59 = vld [vmem:[%s1 + $0x70] sm:$0xff]
  %v60 = vld [vmem:[%s1 + $0x78] sm:$0xff]
  %v61 = vld [vmem:[%s2] sm:$0xff]
  %v62 = vld [vmem:[%s2 + $0x8] sm:$0xff]
  %v63 = vld [vmem:[%s2 + $0x10] sm:$0xff]
  %v64 = vld [vmem:[%s2 + $0x18] sm:$0xff]
  %v65 = vld [vmem:[%s2 + $0x20] sm:$0xff]
  %v66 = vld [vmem:[%s2 + $0x28] sm:$0xff]
  %v67 = vld [vmem:[%s2 + $0x30] sm:$0xff]
  %v68 = vld [vmem:[%s2 + $0x38] sm:$0xff]
  %v69 = vld [vmem:[%s2 + $0x40] sm:$0xff]
  %v70 = vld [vmem:[%s2 + $0x48] sm:$0xff]
  %v71 = vld [vmem:[%s2 + $0x50] sm:$0xff]
  %v72 = vld [vmem:[%s2 + $0x58] sm:$0xff]
  %v73 = vld [vmem:[%s2 + $0x60] sm:$0xff]
  %v74 = vld [vmem:[%s2 + $0x68] sm:$0xff]
  %v75 = vld [vmem:[%s2 + $0x70] sm:$0xff]
  %v76 = vld [vmem:[%s2 + $0x78] sm:$0xff]
  %v77 = vld [vmem:[%s3] sm:$0xf]
  %v78 = vld [vmem:[%s3 + $0x4] sm:$0xf]
  %v79 = vld [vmem:[%s3 + $0x8] sm:$0xf]
  %v80 = vld [vmem:[%s3 + $0xc] sm:$0xf]
  %v81 = vld [vmem:[%s3 + $0x10] sm:$0xf]
  %v82 = vld [vmem:[%s3 + $0x14] sm:$0xf]
  %v83 = vld [vmem:[%s3 + $0x18] sm:$0xf]
  %v84 = vld [vmem:[%s3 + $0x1c] sm:$0xf]
  %v85 = vld [vmem:[%s3 + $0x20] sm:$0xf]
  %v86 = vld [vmem:[%s3 + $0x24] sm:$0xf]
  %v87 = vld [vmem:[%s3 + $0x28] sm:$0xf]
  %v88 = vld [vmem:[%s3 + $0x2c] sm:$0xf]
  %v89 = vld [vmem:[%s3 + $0x30] sm:$0xf]
  %v90 = vld [vmem:[%s3 + $0x34] sm:$0xf]
  %v91 = vld [vmem:[%s3 + $0x38] sm:$0xf]
  %v92 = vld [vmem:[%s3 + $0x3c] sm:$0xf]
  %94 = vset.pattern.permute.xlu0 0
  %95 = vperm.xlu0 %94, %v45
  %v96 = vpop.permute.xlu0 %95
  %99 = vset.pattern.permute.xlu0 0
  %100 = vperm.xlu0 %99, %v46
  %v101 = vpop.permute.xlu0 %100
  %104 = vset.pattern.permute.xlu0 0
  %105 = vperm.xlu0 %104, %v47
  %v106 = vpop.permute.xlu0 %105
  %109 = vset.pattern.permute.xlu0 0
  %110 = vperm.xlu0 %109, %v48
  %v111 = vpop.permute.xlu0 %110
  %114 = vset.pattern.permute.xlu0 0
  %115 = vperm.xlu0 %114, %v49
  %v116 = vpop.permute.xlu0 %115
  %119 = vset.pattern.permute.xlu0 0
  %120 = vperm.xlu0 %119, %v50
  %v121 = vpop.permute.xlu0 %120
  %124 = vset.pattern.permute.xlu0 0
  %125 = vperm.xlu0 %124, %v51
  %v126 = vpop.permute.xlu0 %125
  %129 = vset.pattern.permute.xlu0 0
  %130 = vperm.xlu0 %129, %v52
  %v131 = vpop.permute.xlu0 %130
  %134 = vset.pattern.permute.xlu0 0
  %135 = vperm.xlu0 %134, %v53
  %v136 = vpop.permute.xlu0 %135
  %139 = vset.pattern.permute.xlu0 0
  %140 = vperm.xlu0 %139, %v54
  %v141 = vpop.permute.xlu0 %140
  %144 = vset.pattern.permute.xlu0 0
  %145 = vperm.xlu0 %144, %v55
  %v146 = vpop.permute.xlu0 %145
  %149 = vset.pattern.permute.xlu0 0
  %150 = vperm.xlu0 %149, %v56
  %v151 = vpop.permute.xlu0 %150
  %154 = vset.pattern.permute.xlu0 0
  %155 = vperm.xlu0 %154, %v57
  %v156 = vpop.permute.xlu0 %155
  %159 = vset.pattern.permute.xlu0 0
  %160 = vperm.xlu0 %159, %v58
  %v161 = vpop.permute.xlu0 %160
  %164 = vset.pattern.permute.xlu0 0
  %165 = vperm.xlu0 %164, %v59
  %v166 = vpop.permute.xlu0 %165
  %169 = vset.pattern.permute.xlu0 0
  %170 = vperm.xlu0 %169, %v60
  %v171 = vpop.permute.xlu0 %170
  %v173 = vmul.f32 %v96, %v61
  %v174 = vmul.f32 %v101, %v62
  %v175 = vmul.f32 %v106, %v63
  %v176 = vmul.f32 %v111, %v64
  %v177 = vmul.f32 %v116, %v65
  %v178 = vmul.f32 %v121, %v66
  %v179 = vmul.f32 %v126, %v67
  %v180 = vmul.f32 %v131, %v68
  %v181 = vmul.f32 %v136, %v69
  %v182 = vmul.f32 %v141, %v70
  %v183 = vmul.f32 %v146, %v71
  %v184 = vmul.f32 %v151, %v72
  %v185 = vmul.f32 %v156, %v73
  %v186 = vmul.f32 %v161, %v74
  %v187 = vmul.f32 %v166, %v75
  %v188 = vmul.f32 %v171, %v76
  %v189 = vpack.c.bf16 %v174, %v173
  %v190 = vpack.c.bf16 %v176, %v175
  %v191 = vpack.c.bf16 %v178, %v177
  %v192 = vpack.c.bf16 %v180, %v179
  %v193 = vpack.c.bf16 %v182, %v181
  %v194 = vpack.c.bf16 %v184, %v183
  %v195 = vpack.c.bf16 %v186, %v185
  %v196 = vpack.c.bf16 %v188, %v187
  %v213 = vunpack.c.l.b16 %v29
  %v214 = vunpack.c.l.b16 %v30
  %v215 = vunpack.c.l.b16 %v31
  %v216 = vunpack.c.l.b16 %v32
  %v217 = vunpack.c.l.b16 %v33
  %v218 = vunpack.c.l.b16 %v34
  %v219 = vunpack.c.l.b16 %v35
  %v220 = vunpack.c.l.b16 %v36
  %v221 = vunpack.c.l.b16 %v37
  %v222 = vunpack.c.l.b16 %v38
  %v223 = vunpack.c.l.b16 %v39
  %v224 = vunpack.c.l.b16 %v40
  %v225 = vunpack.c.l.b16 %v41
  %v226 = vunpack.c.l.b16 %v42
  %v227 = vunpack.c.l.b16 %v43
  %v228 = vunpack.c.l.b16 %v44
  %v229 = vpack.c.b16 %v214, %v213
  %v230 = vpack.c.b16 %v216, %v215
  %v231 = vpack.c.b16 %v218, %v217
  %v232 = vpack.c.b16 %v220, %v219
  %v233 = vpack.c.b16 %v222, %v221
  %v234 = vpack.c.b16 %v224, %v223
  %v235 = vpack.c.b16 %v226, %v225
  %v236 = vpack.c.b16 %v228, %v227
  %245 = vmatprep.subr.bf16.mxu0 0
  %246 = vmatpush1.bf16.msra.mxu0 %v189
  %247 = vmatprep.subr.bf16.mxu0 0
  %248 = vmatpush1.bf16.msra.mxu0 %v190
  %249 = vmatprep.subr.bf16.mxu0 0
  %250 = vmatpush1.bf16.msra.mxu0 %v191
  %251 = vmatprep.subr.bf16.mxu0 0
  %252 = vmatpush1.bf16.msra.mxu0 %v192
  %253 = vmatprep.subr.bf16.mxu0 0
  %254 = vmatpush1.bf16.msra.mxu0 %v193
  %255 = vmatprep.subr.bf16.mxu0 0
  %256 = vmatpush1.bf16.msra.mxu0 %v194
  %257 = vmatprep.subr.bf16.mxu0 0
  %258 = vmatpush1.bf16.msra.mxu0 %v195
  %259 = vmatprep.subr.bf16.mxu0 0
  %260 = vmatpush1.bf16.msra.mxu0 %v196
  %261 = vmatprep.subr.bf16.mxu0 0
  %262 = vmatpush1.bf16.msra.mxu0 0
  %263 = vmatprep.subr.bf16.mxu0 0
  %264 = vmatpush1.bf16.msra.mxu0 0
  %265 = vmatprep.subr.bf16.mxu0 0
  %266 = vmatpush1.bf16.msra.mxu0 0
  %267 = vmatprep.subr.bf16.mxu0 0
  %268 = vmatpush1.bf16.msra.mxu0 0
  %269 = vmatprep.subr.bf16.mxu0 0
  %270 = vmatpush1.bf16.msra.mxu0 0
  %271 = vmatprep.subr.bf16.mxu0 0
  %272 = vmatpush1.bf16.msra.mxu0 0
  %273 = vmatprep.subr.bf16.mxu0 0
  %274 = vmatpush1.bf16.msra.mxu0 0
  %275 = vmatprep.subr.bf16.mxu0 0
  %276 = vmatpush1.bf16.msra.mxu0 0
  %277 = vmatprep.mubr.bf16.mxu0 0
  %278 = vmatmul.mubr.bf16.gmra.mrb[0].mxu0 %v229
  %v279 = vpop.f32.mrb[0].mxu0
  %v280 = vadd.f32 0.0, %v279
  %v281 = vpop.f32.mrb[0].mxu0
  %v282 = vpop.f32.mrb[0].mxu0
  %v283 = vadd.f32 0.0, %v282
  %v284 = vpop.f32.mrb[0].mxu0
  %285 = vmatprep.mubr.bf16.mxu0 0
  %286 = vmatmul.mubr.bf16.gmra.mrb[0].mxu0 %v230
  %v287 = vpop.f32.mrb[0].mxu0
  %v288 = vadd.f32 0.0, %v287
  %v289 = vpop.f32.mrb[0].mxu0
  %v290 = vpop.f32.mrb[0].mxu0
  %v291 = vadd.f32 0.0, %v290
  %v292 = vpop.f32.mrb[0].mxu0
  %293 = vmatprep.mubr.bf16.mxu0 0
  %294 = vmatmul.mubr.bf16.gmra.mrb[0].mxu0 %v231
  %v295 = vpop.f32.mrb[0].mxu0
  %v296 = vadd.f32 0.0, %v295
  %v297 = vpop.f32.mrb[0].mxu0
  %v298 = vpop.f32.mrb[0].mxu0
  %v299 = vadd.f32 0.0, %v298
  %v300 = vpop.f32.mrb[0].mxu0
  %301 = vmatprep.mubr.bf16.mxu0 0
  %302 = vmatmul.mubr.bf16.gmra.mrb[0].mxu0 %v232
  %v303 = vpop.f32.mrb[0].mxu0
  %v304 = vadd.f32 0.0, %v303
  %v305 = vpop.f32.mrb[0].mxu0
  %v306 = vpop.f32.mrb[0].mxu0
  %v307 = vadd.f32 0.0, %v306
  %v308 = vpop.f32.mrb[0].mxu0
  %309 = vmatprep.mubr.bf16.mxu0 0
  %310 = vmatmul.mubr.bf16.gmra.mrb[0].mxu0 %v233
  %v311 = vpop.f32.mrb[0].mxu0
  %v312 = vadd.f32 0.0, %v311
  %v313 = vpop.f32.mrb[0].mxu0
  %v314 = vpop.f32.mrb[0].mxu0
  %v315 = vadd.f32 0.0, %v314
  %v316 = vpop.f32.mrb[0].mxu0
  %317 = vmatprep.mubr.bf16.mxu0 0
  %318 = vmatmul.mubr.bf16.gmra.mrb[0].mxu0 %v234
  %v319 = vpop.f32.mrb[0].mxu0
  %v320 = vadd.f32 0.0, %v319
  %v321 = vpop.f32.mrb[0].mxu0
  %v322 = vpop.f32.mrb[0].mxu0
  %v323 = vadd.f32 0.0, %v322
  %v324 = vpop.f32.mrb[0].mxu0
  %325 = vmatprep.mubr.bf16.mxu0 0
  %326 = vmatmul.mubr.bf16.gmra.mrb[0].mxu0 %v235
  %v327 = vpop.f32.mrb[0].mxu0
  %v328 = vadd.f32 0.0, %v327
  %v329 = vpop.f32.mrb[0].mxu0
  %v330 = vpop.f32.mrb[0].mxu0
  %v331 = vadd.f32 0.0, %v330
  %v332 = vpop.f32.mrb[0].mxu0
  %333 = vmatprep.mubr.bf16.mxu0 0
  %334 = vmatmul.mubr.bf16.gmra.mrb[0].mxu0 %v236
  %v335 = vpop.f32.mrb[0].mxu0
  %v336 = vadd.f32 0.0, %v335
  %v337 = vpop.f32.mrb[0].mxu0
  %v338 = vpop.f32.mrb[0].mxu0
  %v339 = vadd.f32 0.0, %v338
  %v340 = vpop.f32.mrb[0].mxu0
  %341 = vdwg.mxu0
  %v342 = vmul.f32 %v96, %v280
  %v343 = vmul.f32 %v101, %v283
  %v344 = vmul.f32 %v106, %v288
  %v345 = vmul.f32 %v111, %v291
  %v346 = vmul.f32 %v116, %v296
  %v347 = vmul.f32 %v121, %v299
  %v348 = vmul.f32 %v126, %v304
  %v349 = vmul.f32 %v131, %v307
  %v350 = vmul.f32 %v136, %v312
  %v351 = vmul.f32 %v141, %v315
  %v352 = vmul.f32 %v146, %v320
  %v353 = vmul.f32 %v151, %v323
  %v354 = vmul.f32 %v156, %v328
  %v355 = vmul.f32 %v161, %v331
  %v356 = vmul.f32 %v166, %v336
  %v357 = vmul.f32 %v171, %v339
  %v358 = vpack.c.bf16 %v343, %v342
  %v359 = vpack.c.bf16 %v345, %v344
  %v360 = vpack.c.bf16 %v347, %v346
  %v361 = vpack.c.bf16 %v349, %v348
  %v362 = vpack.c.bf16 %v351, %v350
  %v363 = vpack.c.bf16 %v353, %v352
  %v364 = vpack.c.bf16 %v355, %v354
  %v365 = vpack.c.bf16 %v357, %v356
  %v382 = vunpack.c.l.b16 %v77
  %v383 = vunpack.c.l.b16 %v78
  %v384 = vunpack.c.l.b16 %v79
  %v385 = vunpack.c.l.b16 %v80
  %v386 = vunpack.c.l.b16 %v81
  %v387 = vunpack.c.l.b16 %v82
  %v388 = vunpack.c.l.b16 %v83
  %v389 = vunpack.c.l.b16 %v84
  %v390 = vunpack.c.l.b16 %v85
  %v391 = vunpack.c.l.b16 %v86
  %v392 = vunpack.c.l.b16 %v87
  %v393 = vunpack.c.l.b16 %v88
  %v394 = vunpack.c.l.b16 %v89
  %v395 = vunpack.c.l.b16 %v90
  %v396 = vunpack.c.l.b16 %v91
  %v397 = vunpack.c.l.b16 %v92
  %v398 = vpack.c.b16 %v383, %v382
  %v399 = vpack.c.b16 %v385, %v384
  %v400 = vpack.c.b16 %v387, %v386
  %v401 = vpack.c.b16 %v389, %v388
  %v402 = vpack.c.b16 %v391, %v390
  %v403 = vpack.c.b16 %v393, %v392
  %v404 = vpack.c.b16 %v395, %v394
  %v405 = vpack.c.b16 %v397, %v396
  %414 = vmatprep.subr.bf16.mxu0 0
  %415 = vmatpush1.bf16.msra.mxu0 %v398
  %416 = vmatprep.subr.bf16.mxu0 0
  %417 = vmatpush1.bf16.msra.mxu0 %v399
  %418 = vmatprep.subr.bf16.mxu0 0
  %419 = vmatpush1.bf16.msra.mxu0 %v400
  %420 = vmatprep.subr.bf16.mxu0 0
  %421 = vmatpush1.bf16.msra.mxu0 %v401
  %422 = vmatprep.subr.bf16.mxu0 0
  %423 = vmatpush1.bf16.msra.mxu0 %v402
  %424 = vmatprep.subr.bf16.mxu0 0
  %425 = vmatpush1.bf16.msra.mxu0 %v403
  %426 = vmatprep.subr.bf16.mxu0 0
  %427 = vmatpush1.bf16.msra.mxu0 %v404
  %428 = vmatprep.subr.bf16.mxu0 0
  %429 = vmatpush1.bf16.msra.mxu0 %v405
  %430 = vmatprep.subr.bf16.mxu0 0
  %431 = vmatpush1.bf16.msra.mxu0 0
  %432 = vmatprep.subr.bf16.mxu0 0
  %433 = vmatpush1.bf16.msra.mxu0 0
  %434 = vmatprep.subr.bf16.mxu0 0
  %435 = vmatpush1.bf16.msra.mxu0 0
  %436 = vmatprep.subr.bf16.mxu0 0
  %437 = vmatpush1.bf16.msra.mxu0 0
  %438 = vmatprep.subr.bf16.mxu0 0
  %439 = vmatpush1.bf16.msra.mxu0 0
  %440 = vmatprep.subr.bf16.mxu0 0
  %441 = vmatpush1.bf16.msra.mxu0 0
  %442 = vmatprep.subr.bf16.mxu0 0
  %443 = vmatpush1.bf16.msra.mxu0 0
  %444 = vmatprep.subr.bf16.mxu0 0
  %445 = vmatpush1.bf16.msra.mxu0 0
  %446 = vmatprep.mubr.bf16.mxu0 0
  %447 = vmatmul.mubr.bf16.gmra.mrb[0].mxu0 %v358
  %v448 = vpop.f32.mrb[0].mxu0
  %v449 = vadd.f32 0.0, %v448
  %v450 = vpop.f32.mrb[0].mxu0
  %v451 = vpop.f32.mrb[0].mxu0
  %v452 = vadd.f32 0.0, %v451
  %v453 = vpop.f32.mrb[0].mxu0
  %454 = vmatprep.mubr.bf16.mxu0 0
  %455 = vmatmul.mubr.bf16.gmra.mrb[0].mxu0 %v359
  %v456 = vpop.f32.mrb[0].mxu0
  %v457 = vadd.f32 0.0, %v456
  %v458 = vpop.f32.mrb[0].mxu0
  %v459 = vpop.f32.mrb[0].mxu0
  %v460 = vadd.f32 0.0, %v459
  %v461 = vpop.f32.mrb[0].mxu0
  %462 = vmatprep.mubr.bf16.mxu0 0
  %463 = vmatmul.mubr.bf16.gmra.mrb[0].mxu0 %v360
  %v464 = vpop.f32.mrb[0].mxu0
  %v465 = vadd.f32 0.0, %v464
  %v466 = vpop.f32.mrb[0].mxu0
  %v467 = vpop.f32.mrb[0].mxu0
  %v468 = vadd.f32 0.0, %v467
  %v469 = vpop.f32.mrb[0].mxu0
  %470 = vmatprep.mubr.bf16.mxu0 0
  %471 = vmatmul.mubr.bf16.gmra.mrb[0].mxu0 %v361
  %v472 = vpop.f32.mrb[0].mxu0
  %v473 = vadd.f32 0.0, %v472
  %v474 = vpop.f32.mrb[0].mxu0
  %v475 = vpop.f32.mrb[0].mxu0
  %v476 = vadd.f32 0.0, %v475
  %v477 = vpop.f32.mrb[0].mxu0
  %478 = vmatprep.mubr.bf16.mxu0 0
  %479 = vmatmul.mubr.bf16.gmra.mrb[0].mxu0 %v362
  %v480 = vpop.f32.mrb[0].mxu0
  %v481 = vadd.f32 0.0, %v480
  %v482 = vpop.f32.mrb[0].mxu0
  %v483 = vpop.f32.mrb[0].mxu0
  %v484 = vadd.f32 0.0, %v483
  %v485 = vpop.f32.mrb[0].mxu0
  %486 = vmatprep.mubr.bf16.mxu0 0
  %487 = vmatmul.mubr.bf16.gmra.mrb[0].mxu0 %v363
  %v488 = vpop.f32.mrb[0].mxu0
  %v489 = vadd.f32 0.0, %v488
  %v490 = vpop.f32.mrb[0].mxu0
  %v491 = vpop.f32.mrb[0].mxu0
  %v492 = vadd.f32 0.0, %v491
  %v493 = vpop.f32.mrb[0].mxu0
  %494 = vmatprep.mubr.bf16.mxu0 0
  %495 = vmatmul.mubr.bf16.gmra.mrb[0].mxu0 %v364
  %v496 = vpop.f32.mrb[0].mxu0
  %v497 = vadd.f32 0.0, %v496
  %v498 = vpop.f32.mrb[0].mxu0
  %v499 = vpop.f32.mrb[0].mxu0
  %v500 = vadd.f32 0.0, %v499
  %v501 = vpop.f32.mrb[0].mxu0
  %502 = vmatprep.mubr.bf16.mxu0 0
  %503 = vmatmul.mubr.bf16.gmra.mrb[0].mxu0 %v365
  %v504 = vpop.f32.mrb[0].mxu0
  %v505 = vadd.f32 0.0, %v504
  %v506 = vpop.f32.mrb[0].mxu0
  %v507 = vpop.f32.mrb[0].mxu0
  %v508 = vadd.f32 0.0, %v507
  %v509 = vpop.f32.mrb[0].mxu0
  %510 = vdwg.mxu0
  %v511 = vmax.f32 %v449, 0.0
  %v512 = vmax.f32 %v452, 0.0
  %v513 = vmax.f32 %v457, 0.0
  %v514 = vmax.f32 %v460, 0.0
  %v515 = vmax.f32 %v465, 0.0
  %v516 = vmax.f32 %v468, 0.0
  %v517 = vmax.f32 %v473, 0.0
  %v518 = vmax.f32 %v476, 0.0
  %v519 = vmax.f32 %v481, 0.0
  %v520 = vmax.f32 %v484, 0.0
  %v521 = vmax.f32 %v489, 0.0
  %v522 = vmax.f32 %v492, 0.0
  %v523 = vmax.f32 %v497, 0.0
  %v524 = vmax.f32 %v500, 0.0
  %v525 = vmax.f32 %v505, 0.0
  %v526 = vmax.f32 %v508, 0.0
  %527 = vst [vmem:[%s7] sm:$0xff] %v511
  %528 = vst [vmem:[%s7 + $0x8] sm:$0xff] %v512
  %529 = vst [vmem:[%s7 + $0x10] sm:$0xff] %v513
  %530 = vst [vmem:[%s7 + $0x18] sm:$0xff] %v514
  %531 = vst [vmem:[%s7 + $0x20] sm:$0xff] %v515
  %532 = vst [vmem:[%s7 + $0x28] sm:$0xff] %v516
  %533 = vst [vmem:[%s7 + $0x30] sm:$0xff] %v517
  %534 = vst [vmem:[%s7 + $0x38] sm:$0xff] %v518
  %535 = vst [vmem:[%s7 + $0x40] sm:$0xff] %v519
  %536 = vst [vmem:[%s7 + $0x48] sm:$0xff] %v520
  %537 = vst [vmem:[%s7 + $0x50] sm:$0xff] %v521
  %538 = vst [vmem:[%s7 + $0x58] sm:$0xff] %v522
  %539 = vst [vmem:[%s7 + $0x60] sm:$0xff] %v523
  %540 = vst [vmem:[%s7 + $0x68] sm:$0xff] %v524
  %541 = vst [vmem:[%s7 + $0x70] sm:$0xff] %v525
  %542 = vst [vmem:[%s7 + $0x78] sm:$0xff] %v526
  %v543 = vld [vmem:[%s5] sm:$0xf]
  %v544 = vld [vmem:[%s5 + $0x4] sm:$0xf]
  %v545 = vld [vmem:[%s5 + $0x8] sm:$0xf]
  %v546 = vld [vmem:[%s5 + $0xc] sm:$0xf]
  %v547 = vld [vmem:[%s5 + $0x10] sm:$0xf]
  %v548 = vld [vmem:[%s5 + $0x14] sm:$0xf]
  %v549 = vld [vmem:[%s5 + $0x18] sm:$0xf]
  %v550 = vld [vmem:[%s5 + $0x1c] sm:$0xf]
  %v551 = vld [vmem:[%s5 + $0x20] sm:$0xf]
  %v552 = vld [vmem:[%s5 + $0x24] sm:$0xf]
  %v553 = vld [vmem:[%s5 + $0x28] sm:$0xf]
  %v554 = vld [vmem:[%s5 + $0x2c] sm:$0xf]
  %v555 = vld [vmem:[%s5 + $0x30] sm:$0xf]
  %v556 = vld [vmem:[%s5 + $0x34] sm:$0xf]
  %v557 = vld [vmem:[%s5 + $0x38] sm:$0xf]
  %v558 = vld [vmem:[%s5 + $0x3c] sm:$0xf]
  %v559 = vpack.c.bf16 %v512, %v511
  %v560 = vpack.c.bf16 %v514, %v513
  %v561 = vpack.c.bf16 %v516, %v515
  %v562 = vpack.c.bf16 %v518, %v517
  %v563 = vpack.c.bf16 %v520, %v519
  %v564 = vpack.c.bf16 %v522, %v521
  %v565 = vpack.c.bf16 %v524, %v523
  %v566 = vpack.c.bf16 %v526, %v525
  %v583 = vunpack.c.l.b16 %v543
  %v584 = vunpack.c.l.b16 %v544
  %v585 = vunpack.c.l.b16 %v545
  %v586 = vunpack.c.l.b16 %v546
  %v587 = vunpack.c.l.b16 %v547
  %v588 = vunpack.c.l.b16 %v548
  %v589 = vunpack.c.l.b16 %v549
  %v590 = vunpack.c.l.b16 %v550
  %v591 = vunpack.c.l.b16 %v551
  %v592 = vunpack.c.l.b16 %v552
  %v593 = vunpack.c.l.b16 %v553
  %v594 = vunpack.c.l.b16 %v554
  %v595 = vunpack.c.l.b16 %v555
  %v596 = vunpack.c.l.b16 %v556
  %v597 = vunpack.c.l.b16 %v557
  %v598 = vunpack.c.l.b16 %v558
  %v599 = vpack.c.b16 %v584, %v583
  %v600 = vpack.c.b16 %v586, %v585
  %v601 = vpack.c.b16 %v588, %v587
  %v602 = vpack.c.b16 %v590, %v589
  %v603 = vpack.c.b16 %v592, %v591
  %v604 = vpack.c.b16 %v594, %v593
  %v605 = vpack.c.b16 %v596, %v595
  %v606 = vpack.c.b16 %v598, %v597
  %615 = vmatprep.subr.bf16.mxu0 0
  %616 = vmatpush1.bf16.msra.mxu0 %v599
  %617 = vmatprep.subr.bf16.mxu0 0
  %618 = vmatpush1.bf16.msra.mxu0 %v600
  %619 = vmatprep.subr.bf16.mxu0 0
  %620 = vmatpush1.bf16.msra.mxu0 %v601
  %621 = vmatprep.subr.bf16.mxu0 0
  %622 = vmatpush1.bf16.msra.mxu0 %v602
  %623 = vmatprep.subr.bf16.mxu0 0
  %624 = vmatpush1.bf16.msra.mxu0 %v603
  %625 = vmatprep.subr.bf16.mxu0 0
  %626 = vmatpush1.bf16.msra.mxu0 %v604
  %627 = vmatprep.subr.bf16.mxu0 0
  %628 = vmatpush1.bf16.msra.mxu0 %v605
  %629 = vmatprep.subr.bf16.mxu0 0
  %630 = vmatpush1.bf16.msra.mxu0 %v606
  %631 = vmatprep.subr.bf16.mxu0 0
  %632 = vmatpush1.bf16.msra.mxu0 0
  %633 = vmatprep.subr.bf16.mxu0 0
  %634 = vmatpush1.bf16.msra.mxu0 0
  %635 = vmatprep.subr.bf16.mxu0 0
  %636 = vmatpush1.bf16.msra.mxu0 0
  %637 = vmatprep.subr.bf16.mxu0 0
  %638 = vmatpush1.bf16.msra.mxu0 0
  %639 = vmatprep.subr.bf16.mxu0 0
  %640 = vmatpush1.bf16.msra.mxu0 0
  %641 = vmatprep.subr.bf16.mxu0 0
  %642 = vmatpush1.bf16.msra.mxu0 0
  %643 = vmatprep.subr.bf16.mxu0 0
  %644 = vmatpush1.bf16.msra.mxu0 0
  %645 = vmatprep.subr.bf16.mxu0 0
  %646 = vmatpush1.bf16.msra.mxu0 0
  %647 = vmatprep.mubr.bf16.mxu0 0
  %648 = vmatmul.mubr.bf16.gmra.mrb[0].mxu0 %v559
  %v649 = vpop.f32.mrb[0].mxu0
  %v650 = vadd.f32 0.0, %v649
  %v651 = vpop.f32.mrb[0].mxu0
  %v652 = vpop.f32.mrb[0].mxu0
  %v653 = vadd.f32 0.0, %v652
  %v654 = vpop.f32.mrb[0].mxu0
  %655 = vmatprep.mubr.bf16.mxu0 0
  %656 = vmatmul.mubr.bf16.gmra.mrb[0].mxu0 %v560
  %v657 = vpop.f32.mrb[0].mxu0
  %v658 = vadd.f32 0.0, %v657
  %v659 = vpop.f32.mrb[0].mxu0
  %v660 = vpop.f32.mrb[0].mxu0
  %v661 = vadd.f32 0.0, %v660
  %v662 = vpop.f32.mrb[0].mxu0
  %663 = vmatprep.mubr.bf16.mxu0 0
  %664 = vmatmul.mubr.bf16.gmra.mrb[0].mxu0 %v561
  %v665 = vpop.f32.mrb[0].mxu0
  %v666 = vadd.f32 0.0, %v665
  %v667 = vpop.f32.mrb[0].mxu0
  %v668 = vpop.f32.mrb[0].mxu0
  %v669 = vadd.f32 0.0, %v668
  %v670 = vpop.f32.mrb[0].mxu0
  %671 = vmatprep.mubr.bf16.mxu0 0
  %672 = vmatmul.mubr.bf16.gmra.mrb[0].mxu0 %v562
  %v673 = vpop.f32.mrb[0].mxu0
  %v674 = vadd.f32 0.0, %v673
  %v675 = vpop.f32.mrb[0].mxu0
  %v676 = vpop.f32.mrb[0].mxu0
  %v677 = vadd.f32 0.0, %v676
  %v678 = vpop.f32.mrb[0].mxu0
  %679 = vmatprep.mubr.bf16.mxu0 0
  %680 = vmatmul.mubr.bf16.gmra.mrb[0].mxu0 %v563
  %v681 = vpop.f32.mrb[0].mxu0
  %v682 = vadd.f32 0.0, %v681
  %v683 = vpop.f32.mrb[0].mxu0
  %v684 = vpop.f32.mrb[0].mxu0
  %v685 = vadd.f32 0.0, %v684
  %v686 = vpop.f32.mrb[0].mxu0
  %687 = vmatprep.mubr.bf16.mxu0 0
  %688 = vmatmul.mubr.bf16.gmra.mrb[0].mxu0 %v564
  %v689 = vpop.f32.mrb[0].mxu0
  %v690 = vadd.f32 0.0, %v689
  %v691 = vpop.f32.mrb[0].mxu0
  %v692 = vpop.f32.mrb[0].mxu0
  %v693 = vadd.f32 0.0, %v692
  %v694 = vpop.f32.mrb[0].mxu0
  %695 = vmatprep.mubr.bf16.mxu0 0
  %696 = vmatmul.mubr.bf16.gmra.mrb[0].mxu0 %v565
  %v697 = vpop.f32.mrb[0].mxu0
  %v698 = vadd.f32 0.0, %v697
  %v699 = vpop.f32.mrb[0].mxu0
  %v700 = vpop.f32.mrb[0].mxu0
  %v701 = vadd.f32 0.0, %v700
  %v702 = vpop.f32.mrb[0].mxu0
  %703 = vmatprep.mubr.bf16.mxu0 0
  %704 = vmatmul.mubr.bf16.gmra.mrb[0].mxu0 %v566
  %v705 = vpop.f32.mrb[0].mxu0
  %v706 = vadd.f32 0.0, %v705
  %v707 = vpop.f32.mrb[0].mxu0
  %v708 = vpop.f32.mrb[0].mxu0
  %v709 = vadd.f32 0.0, %v708
  %v710 = vpop.f32.mrb[0].mxu0
  %711 = vdwg.mxu0
  %v712 = vmul.f32 %v96, %v650
  %v713 = vmul.f32 %v101, %v653
  %v714 = vmul.f32 %v106, %v658
  %v715 = vmul.f32 %v111, %v661
  %v716 = vmul.f32 %v116, %v666
  %v717 = vmul.f32 %v121, %v669
  %v718 = vmul.f32 %v126, %v674
  %v719 = vmul.f32 %v131, %v677
  %v720 = vmul.f32 %v136, %v682
  %v721 = vmul.f32 %v141, %v685
  %v722 = vmul.f32 %v146, %v690
  %v723 = vmul.f32 %v151, %v693
  %v724 = vmul.f32 %v156, %v698
  %v725 = vmul.f32 %v161, %v701
  %v726 = vmul.f32 %v166, %v706
  %v727 = vmul.f32 %v171, %v709
  %v728 = vpack.c.bf16 %v713, %v712
  %v729 = vpack.c.bf16 %v715, %v714
  %v730 = vpack.c.bf16 %v717, %v716
  %v731 = vpack.c.bf16 %v719, %v718
  %v732 = vpack.c.bf16 %v721, %v720
  %v733 = vpack.c.bf16 %v723, %v722
  %v734 = vpack.c.bf16 %v725, %v724
  %v735 = vpack.c.bf16 %v727, %v726
  %736 = vmatprep.subr.bf16.mxu0 0
  %737 = vmatpush1.bf16.msra.mxu0 %v728
  %738 = vmatprep.subr.bf16.mxu0 0
  %739 = vmatpush1.bf16.msra.mxu0 %v729
  %740 = vmatprep.subr.bf16.mxu0 0
  %741 = vmatpush1.bf16.msra.mxu0 %v730
  %742 = vmatprep.subr.bf16.mxu0 0
  %743 = vmatpush1.bf16.msra.mxu0 %v731
  %744 = vmatprep.subr.bf16.mxu0 0
  %745 = vmatpush1.bf16.msra.mxu0 %v732
  %746 = vmatprep.subr.bf16.mxu0 0
  %747 = vmatpush1.bf16.msra.mxu0 %v733
  %748 = vmatprep.subr.bf16.mxu0 0
  %749 = vmatpush1.bf16.msra.mxu0 %v734
  %750 = vmatprep.subr.bf16.mxu0 0
  %751 = vmatpush1.bf16.msra.mxu0 %v735
  %752 = vmatprep.subr.bf16.mxu0 0
  %753 = vmatpush1.bf16.msra.mxu0 0
  %754 = vmatprep.subr.bf16.mxu0 0
  %755 = vmatpush1.bf16.msra.mxu0 0
  %756 = vmatprep.subr.bf16.mxu0 0
  %757 = vmatpush1.bf16.msra.mxu0 0
  %758 = vmatprep.subr.bf16.mxu0 0
  %759 = vmatpush1.bf16.msra.mxu0 0
  %760 = vmatprep.subr.bf16.mxu0 0
  %761 = vmatpush1.bf16.msra.mxu0 0
  %762 = vmatprep.subr.bf16.mxu0 0
  %763 = vmatpush1.bf16.msra.mxu0 0
  %764 = vmatprep.subr.bf16.mxu0 0
  %765 = vmatpush1.bf16.msra.mxu0 0
  %766 = vmatprep.subr.bf16.mxu0 0
  %767 = vmatpush1.bf16.msra.mxu0 0
  %768 = vmatprep.mubr.bf16.mxu0 0
  %769 = vmatmul.mubr.bf16.gmra.mrb[0].mxu0 %v229
  %v770 = vpop.f32.mrb[0].mxu0
  %v771 = vadd.f32 0.0, %v770
  %v772 = vpop.f32.mrb[0].mxu0
  %v773 = vpop.f32.mrb[0].mxu0
  %v774 = vadd.f32 0.0, %v773
  %v775 = vpop.f32.mrb[0].mxu0
  %776 = vmatprep.mubr.bf16.mxu0 0
  %777 = vmatmul.mubr.bf16.gmra.mrb[0].mxu0 %v230
  %v778 = vpop.f32.mrb[0].mxu0
  %v779 = vadd.f32 0.0, %v778
  %v780 = vpop.f32.mrb[0].mxu0
  %v781 = vpop.f32.mrb[0].mxu0
  %v782 = vadd.f32 0.0, %v781
  %v783 = vpop.f32.mrb[0].mxu0
  %784 = vmatprep.mubr.bf16.mxu0 0
  %785 = vmatmul.mubr.bf16.gmra.mrb[0].mxu0 %v231
  %v786 = vpop.f32.mrb[0].mxu0
  %v787 = vadd.f32 0.0, %v786
  %v788 = vpop.f32.mrb[0].mxu0
  %v789 = vpop.f32.mrb[0].mxu0
  %v790 = vadd.f32 0.0, %v789
  %v791 = vpop.f32.mrb[0].mxu0
  %792 = vmatprep.mubr.bf16.mxu0 0
  %793 = vmatmul.mubr.bf16.gmra.mrb[0].mxu0 %v232
  %v794 = vpop.f32.mrb[0].mxu0
  %v795 = vadd.f32 0.0, %v794
  %v796 = vpop.f32.mrb[0].mxu0
  %v797 = vpop.f32.mrb[0].mxu0
  %v798 = vadd.f32 0.0, %v797
  %v799 = vpop.f32.mrb[0].mxu0
  %800 = vmatprep.mubr.bf16.mxu0 0
  %801 = vmatmul.mubr.bf16.gmra.mrb[0].mxu0 %v233
  %v802 = vpop.f32.mrb[0].mxu0
  %v803 = vadd.f32 0.0, %v802
  %v804 = vpop.f32.mrb[0].mxu0
  %v805 = vpop.f32.mrb[0].mxu0
  %v806 = vadd.f32 0.0, %v805
  %v807 = vpop.f32.mrb[0].mxu0
  %808 = vmatprep.mubr.bf16.mxu0 0
  %809 = vmatmul.mubr.bf16.gmra.mrb[0].mxu0 %v234
  %v810 = vpop.f32.mrb[0].mxu0
  %v811 = vadd.f32 0.0, %v810
  %v812 = vpop.f32.mrb[0].mxu0
  %v813 = vpop.f32.mrb[0].mxu0
  %v814 = vadd.f32 0.0, %v813
  %v815 = vpop.f32.mrb[0].mxu0
  %816 = vmatprep.mubr.bf16.mxu0 0
  %817 = vmatmul.mubr.bf16.gmra.mrb[0].mxu0 %v235
  %v818 = vpop.f32.mrb[0].mxu0
  %v819 = vadd.f32 0.0, %v818
  %v820 = vpop.f32.mrb[0].mxu0
  %v821 = vpop.f32.mrb[0].mxu0
  %v822 = vadd.f32 0.0, %v821
  %v823 = vpop.f32.mrb[0].mxu0
  %824 = vmatprep.mubr.bf16.mxu0 0
  %825 = vmatmul.mubr.bf16.gmra.mrb[0].mxu0 %v236
  %v826 = vpop.f32.mrb[0].mxu0
  %v827 = vadd.f32 0.0, %v826
  %v828 = vpop.f32.mrb[0].mxu0
  %v829 = vpop.f32.mrb[0].mxu0
  %v830 = vadd.f32 0.0, %v829
  %v831 = vpop.f32.mrb[0].mxu0
  %832 = vdwg.mxu0
  %v833 = vmul.f32 %v96, %v771
  %v834 = vmul.f32 %v101, %v774
  %v835 = vmul.f32 %v106, %v779
  %v836 = vmul.f32 %v111, %v782
  %v837 = vmul.f32 %v116, %v787
  %v838 = vmul.f32 %v121, %v790
  %v839 = vmul.f32 %v126, %v795
  %v840 = vmul.f32 %v131, %v798
  %v841 = vmul.f32 %v136, %v803
  %v842 = vmul.f32 %v141, %v806
  %v843 = vmul.f32 %v146, %v811
  %v844 = vmul.f32 %v151, %v814
  %v845 = vmul.f32 %v156, %v819
  %v846 = vmul.f32 %v161, %v822
  %v847 = vmul.f32 %v166, %v827
  %v848 = vmul.f32 %v171, %v830
  %v849 = vmax.f32 %v833, 0.0
  %v850 = vmax.f32 %v834, 0.0
  %v851 = vmax.f32 %v835, 0.0
  %v852 = vmax.f32 %v836, 0.0
  %v853 = vmax.f32 %v837, 0.0
  %v854 = vmax.f32 %v838, 0.0
  %v855 = vmax.f32 %v839, 0.0
  %v856 = vmax.f32 %v840, 0.0
  %v857 = vmax.f32 %v841, 0.0
  %v858 = vmax.f32 %v842, 0.0
  %v859 = vmax.f32 %v843, 0.0
  %v860 = vmax.f32 %v844, 0.0
  %v861 = vmax.f32 %v845, 0.0
  %v862 = vmax.f32 %v846, 0.0
  %v863 = vmax.f32 %v847, 0.0
  %v864 = vmax.f32 %v848, 0.0
  %865 = vst [vmem:[%s8] sm:$0xff] %v849
  %866 = vst [vmem:[%s8 + $0x8] sm:$0xff] %v850
  %867 = vst [vmem:[%s8 + $0x10] sm:$0xff] %v851
  %868 = vst [vmem:[%s8 + $0x18] sm:$0xff] %v852
  %869 = vst [vmem:[%s8 + $0x20] sm:$0xff] %v853
  %870 = vst [vmem:[%s8 + $0x28] sm:$0xff] %v854
  %871 = vst [vmem:[%s8 + $0x30] sm:$0xff] %v855
  %872 = vst [vmem:[%s8 + $0x38] sm:$0xff] %v856
  %873 = vst [vmem:[%s8 + $0x40] sm:$0xff] %v857
  %874 = vst [vmem:[%s8 + $0x48] sm:$0xff] %v858
  %875 = vst [vmem:[%s8 + $0x50] sm:$0xff] %v859
  %876 = vst [vmem:[%s8 + $0x58] sm:$0xff] %v860
  %877 = vst [vmem:[%s8 + $0x60] sm:$0xff] %v861
  %878 = vst [vmem:[%s8 + $0x68] sm:$0xff] %v862
  %879 = vst [vmem:[%s8 + $0x70] sm:$0xff] %v863
  %880 = vst [vmem:[%s8 + $0x78] sm:$0xff] %v864
  // Predicated region
  $region30: #{fused_dense_gcn_block.1} parent=0 // pred_check
    _
  $region31: #{fused_dense_gcn_block.1} parent=0 // pred_check_branch
    %882 = sbr.rel (0) target = $region33
  $region32: #{fused_dense_gcn_block.1} parent=0 // pred_region
    _
  $region33: #{fused_dense_gcn_block.1} parent=0 // pred_fallthru
    _
  // Predicated region
  $region34: #{fused_dense_gcn_block.1} parent=0 // pred_check
    _
  $region35: #{fused_dense_gcn_block.1} parent=0 // pred_check_branch
    %884 = sbr.rel (0) target = $region37
  $region36: #{fused_dense_gcn_block.1} parent=0 // pred_region
    _
  $region37: #{fused_dense_gcn_block.1} parent=0 // pred_fallthru
    _
  // Predicated region
  $region38: #{fused_dense_gcn_block.1} parent=0 // pred_check
    _
  $region39: #{fused_dense_gcn_block.1} parent=0 // pred_check_branch
    %886 = sbr.rel (0) target = $region41
  $region40: #{fused_dense_gcn_block.1} parent=0 // pred_region
    _
  $region41: #{fused_dense_gcn_block.1} parent=0 // pred_fallthru
    _
  // Predicated region
  $region42: #{fused_dense_gcn_block.1} parent=0 // pred_check
    _
  $region43: #{fused_dense_gcn_block.1} parent=0 // pred_check_branch
    %888 = sbr.rel (0) target = $region45
  $region44: #{fused_dense_gcn_block.1} parent=0 // pred_region
    _
  $region45: #{fused_dense_gcn_block.1} parent=0 // pred_fallthru
    _

</llo_original>
